<compile_context>
chip_gen: v6e
topology: v6e:2x2x1
jax: 0.10.0
libtpu: 0.0.40
codegen_flags: <defaults>
</compile_context>

<pallas_src>
import math

import jax
import jax.numpy as jnp
from jax import lax
from jax.experimental import pallas as pl
from jax.experimental.pallas import tpu as pltpu


# ----------------------------- Kernel A: block-mask dilation -------------------

def _dilate_kernel(m_ref, ab_ref, bc_ref, bm_ref):
    # m_ref: (nb*H, W) seed mask in {0,1}; ab_ref: (nb*H, nb*H) row band
    # (block-diagonal over samples); bc_ref: (W, W) column band.  bf16 operands
    # are exact for these small-integer values; accumulation is f32.
    m = m_ref[...].astype(jnp.bfloat16)
    t = jnp.dot(m, bc_ref[...], preferred_element_type=jnp.float32)      # col window sums
    counts = jnp.dot(ab_ref[...], t.astype(jnp.bfloat16),
                     preferred_element_type=jnp.float32)                 # full window sums
    # block_mask = 1 - (window max)  ==  (window sum == 0) for a {0,1} mask.
    bm_ref[...] = (counts < 0.5).astype(bm_ref.dtype)


def _col_band(W, lo, hi):
    # B[w, j] = 1 iff (w - j) in [lo, hi]   (column window)
    r = lax.broadcasted_iota(jnp.int32, (W, W), 0)
    c = lax.broadcasted_iota(jnp.int32, (W, W), 1)
    d = r - c
    return ((d >= lo) & (d <= hi)).astype(jnp.bfloat16)


def _row_band_block(nb, H, lo, hi):
    # Block-diagonal banded matrix over nb stacked samples:
    # A[i, h] = 1 iff same sample and (h - i) in [lo, hi]   (row window)
    n = nb * H
    r = lax.broadcasted_iota(jnp.int32, (n, n), 0)
    c = lax.broadcasted_iota(jnp.int32, (n, n), 1)
    d = c - r
    same = (r // H) == (c // H)
    return (same & (d >= lo) & (d <= hi)).astype(jnp.bfloat16)


def _choose_nb(N, H):
    # nb*H must be a multiple of 8 (sublane rule) and the (nb*H)^2 band matrix
    # should stay small; never pad far past N (prime N handled by padding, not
    # by degenerating to nb=1-per-step tiny matmuls).
    base = 8 // math.gcd(H, 8)              # smallest nb with (nb*H) % 8 == 0
    nb = base
    while nb * 2 * H <= 1024:
        nb *= 2
    nb = min(nb, base * pl.cdiv(N, base))
    return nb


def _compute_block_mask(seed_mask, block_size):
    """seed_mask: (N, H, W) f32 in {0,1} -> block_mask (N, H, W) f32 in {0,1}."""
    N, H, W = seed_mask.shape
    pad = block_size // 2
    lo, hi = -pad, block_size - 1 - pad     # even-block-size [:-1, :-1] crop folded in

    nb = _choose_nb(N, H)
    G = pl.cdiv(N, nb)
    n_pad = G * nb

    m2 = seed_mask.reshape(N * H, W)
    if n_pad != N:
        # Zero padding -> padded samples give block_mask == 1, sliced off below.
        m2 = jnp.pad(m2, ((0, (n_pad - N) * H), (0, 0)))

    a_blk = _row_band_block(nb, H, lo, hi)          # (nb*H, nb*H), grid-invariant
    b_col = _col_band(W, lo, hi)                    # (W, W),       grid-invariant

    bm2 = pl.pallas_call(
        _dilate_kernel,
        out_shape=jax.ShapeDtypeStruct((n_pad * H, W), jnp.float32),
        grid=(G,),
        in_specs=[pl.BlockSpec((nb * H, W), lambda i: (i, 0)),
                  pl.BlockSpec((nb * H, nb * H), lambda i: (0, 0)),   # resident
                  pl.BlockSpec((W, W), lambda i: (0, 0))],            # resident
        out_specs=pl.BlockSpec((nb * H, W), lambda i: (i, 0)),
        compiler_params=pltpu.CompilerParams(
            dimension_semantics=("parallel",)),
    )(m2, a_blk, b_col)

    return bm2[: N * H].reshape(N, H, W)


# ----------------------------- Kernel B: lane-dense apply ----------------------

def _apply_kernel(x_ref, bms_ref, o_ref):
    # x_ref: (1, Cb, HWb)  bms_ref: (1, 1, HWb) scaled mask -> broadcast over C.
    x = x_ref[...].astype(jnp.float32)
    o_ref[...] = (x * bms_ref[...]).astype(o_ref.dtype)


def _vmem_capacity_bytes():
    try:
        if jax.devices()[0].platform == "tpu":
            return int(pltpu.get_tpu_info().vmem_capacity_bytes)
    except Exception:
        pass
    return 64 << 20          # conservative default (v7x per-core VMEM)


def _choose_apply_blocks(C, HW, itemsize, budget):
    # Cb: full C or a multiple-of-8 divisor; HWb: full HW or a multiple-of-128
    # divisor.  Pick the largest legal block under the budget; if nothing fits,
    # fall back to the smallest legal block (never silently over-budget).
    cb_opts = [C] + [c for c in range(8, C, 8) if C % c == 0]
    hw_opts = [HW] + [h for h in range(128, HW, 128) if HW % h == 0]
    best = None
    for cb in cb_opts:
        for hwb in hw_opts:
            if cb * hwb * itemsize <= budget:
                if best is None or cb * hwb > best[0] * best[1]:
                    best = (cb, hwb)
    if best is None:
        best = (8 if C % 8 == 0 else C, 128 if HW % 128 == 0 else HW)
    return best


def _apply(x4, bms):
    N, C, H, W = x4.shape
    HW = H * W
    x = x4.reshape(N, C, HW)                 # contiguous, lane-dense last dim
    bms3 = bms.reshape(N, 1, HW)

    cap = _vmem_capacity_bytes()
    budget = max(2 << 20, cap // 8)          # generation-aware per-block budget
    Cb, HWb = _choose_apply_blocks(C, HW, x4.dtype.itemsize, budget)
    vmem_limit = int(min(cap * 3 // 4, 96 << 20))

    out = pl.pallas_call(
        _apply_kernel,
        out_shape=jax.ShapeDtypeStruct((N, C, HW), x4.dtype),
        grid=(N, HW // HWb, C // Cb),        # channel axis innermost -> bms block reused
        in_specs=[pl.BlockSpec((1, Cb, HWb), lambda n, h, c: (n, c, h)),
                  pl.BlockSpec((1, 1, HWb), lambda n, h, c: (n, 0, h))],
        out_specs=pl.BlockSpec((1, Cb, HWb), lambda n, h, c: (n, c, h)),
        compiler_params=pltpu.CompilerParams(
            dimension_semantics=("parallel", "parallel", "arbitrary"),
            vmem_limit_bytes=vmem_limit),
    )(x, bms3)
    return out.reshape(N, C, H, W)


# ----------------------------- public wrapper ----------------------------------

def schedule_dropblock(x, seed, *, block_size, drop_prob, training=True,
                       return_debug=False):
    """ScheduleDropBlock.forward (per_channel=False path) at the current drop_prob."""
    assert x.ndim == 4, "Expected input with 4 dimensions (N, C, H, W)"
    if (not training) or drop_prob == 0.0:
        return (x, None, None) if return_debug else x

    N, C, H, W = x.shape
    bs = int(block_size)
    # gamma = drop_prob / bs^2 * HW / ((H-bs+1)(W-bs+1))
    gamma = (drop_prob / (bs ** 2)) * (H * W) / ((H - bs + 1) * (W - bs + 1))

    # Bernoulli(gamma) seed mask (== torch.rand(N, H, W) < gamma; same
    # distribution, different RNG stream).
    key = jax.random.PRNGKey(seed)
    u = jax.random.uniform(key, (N, H, W), dtype=jnp.float32)
    seed_mask = (u < jnp.float32(gamma)).astype(jnp.float32)

    block_mask = _compute_block_mask(seed_mask, bs)          # (N, H, W) f32 {0,1}

    numel = jnp.float32(N * H * W)                           # block_mask.numel()
    bm_sum = jnp.sum(block_mask)
    # Guard against the (astronomically unlikely) fully-blocked map; PyTorch
    # would produce inf here — intentional deviation.
    scale = numel / jnp.maximum(bm_sum, jnp.float32(1.0))
    bms = block_mask * scale                                 # scale folded once (tiny array)

    out = _apply(x, bms)                                     # native dtype in / out
    return (out, seed_mask, block_mask) if return_debug else out


if __name__ == "__main__":
    key = jax.random.PRNGKey(0)
    N, C, H, W = 2, 4, 16, 16
    drop_prob = 0.3          # start_dropout_rate; stop_rate/steps only matter for .step()

    x = jax.random.normal(key, (N, C, H, W), dtype=jnp.float32)

    for block_size in (3, 4):        # odd and even (even exercises the crop path)
        out, sm, bm = schedule_dropblock(x, seed=123 + block_size,
                                         block_size=block_size,
                                         drop_prob=drop_prob,
                                         training=True, return_debug=True)
        out = jax.block_until_ready(out)
        assert out.shape == x.shape and out.dtype == x.dtype

        # --- pure-JAX reference fed by the kernel's own Bernoulli seed mask ---
        sm = jnp.asarray(sm, jnp.float32)
        assert bool(jnp.all((sm == 0.0) | (sm == 1.0))), "seed mask not binary"
        pad = block_size // 2
        pooled = lax.reduce_window(sm, -jnp.inf, lax.max,
                                   (1, block_size, block_size), (1, 1, 1),
                                   [(0, 0), (pad, pad), (pad, pad)])
        if block_size % 2 == 0:
            pooled = pooled[:, :-1, :-1]
        bm_ref = 1.0 - pooled
        assert jnp.allclose(jnp.asarray(bm, jnp.float32), bm_ref), "block_mask mismatch"
        scale_ref = bm_ref.size / jnp.maximum(bm_ref.sum(), 1.0)
        ref = x * bm_ref[:, None, :, :] * scale_ref
        assert jnp.allclose(out, ref, atol=1e-5, rtol=1e-5), "output mismatch"

    # eval / drop_prob == 0 pass-through
    assert schedule_dropblock(x, seed=0, block_size=3, drop_prob=drop_prob,
                              training=False) is x
    print("KERNEL_OK")
</pallas_src>

<mosaic_0001>
module attributes {stable_mosaic.version = 11 : i64} {
  func.func @_dilate_kernel(%arg0: i32, %arg1: memref<32x16xf32, #tpu.memory_space<vmem>>, %arg2: memref<32x32xbf16, #tpu.memory_space<vmem>>, %arg3: memref<16x16xbf16, #tpu.memory_space<vmem>>, %arg4: memref<32x16xf32, #tpu.memory_space<vmem>>) attributes {dimension_semantics = [#tpu.dimension_semantics<parallel>], iteration_bounds = array<i64: 1>, scalar_prefetch = 0 : i64, scratch_operands = 0 : i64, tpu.core_type = #tpu.core_type<tc>, window_params = [{transform_indices = @transform_0, window_bounds = array<i64: 32, 16>}, {pipeline_mode = #tpu.pipeline_mode<synchronous>, transform_indices = @transform_1, window_bounds = array<i64: 32, 32>}, {pipeline_mode = #tpu.pipeline_mode<synchronous>, transform_indices = @transform_2, window_bounds = array<i64: 16, 16>}, {transform_indices = @transform_3, window_bounds = array<i64: 32, 16>}]} {
    %c0 = arith.constant 0 : index
    %c0_0 = arith.constant 0 : index
    %0 = vector.load %arg1[%c0, %c0_0] : memref<32x16xf32, #tpu.memory_space<vmem>>, vector<32x16xf32>
    %1 = arith.truncf %0 : vector<32x16xf32> to vector<32x16xbf16>
    %c0_1 = arith.constant 0 : index
    %c0_2 = arith.constant 0 : index
    %2 = vector.load %arg3[%c0_1, %c0_2] : memref<16x16xbf16, #tpu.memory_space<vmem>>, vector<16x16xbf16>
    %cst = arith.constant dense<0.000000e+00> : vector<32x16xf32>
    %3 = tpu.matmul %1, %2, %cst {dimension_numbers = #tpu.dot_dimension_numbers<[1], [0], [0], [1], [0, 0, 1, 1], [], []>} : vector<32x16xbf16>, vector<16x16xbf16>, vector<32x16xf32> -> vector<32x16xf32>
    %c0_3 = arith.constant 0 : index
    %c0_4 = arith.constant 0 : index
    %4 = vector.load %arg2[%c0_3, %c0_4] : memref<32x32xbf16, #tpu.memory_space<vmem>>, vector<32x32xbf16>
    %5 = arith.truncf %3 : vector<32x16xf32> to vector<32x16xbf16>
    %cst_5 = arith.constant dense<0.000000e+00> : vector<32x16xf32>
    %6 = tpu.matmul %4, %5, %cst_5 {dimension_numbers = #tpu.dot_dimension_numbers<[1], [0], [0], [1], [0, 0, 1, 1], [], []>} : vector<32x32xbf16>, vector<32x16xbf16>, vector<32x16xf32> -> vector<32x16xf32>
    %cst_6 = arith.constant 5.000000e-01 : f32
    %7 = vector.broadcast %cst_6 : f32 to vector<32x16xf32>
    %8 = arith.cmpf olt, %6, %7 : vector<32x16xf32>
    %9 = arith.extui %8 : vector<32x16xi1> to vector<32x16xi32>
    %10 = arith.sitofp %9 : vector<32x16xi32> to vector<32x16xf32>
    %c0_7 = arith.constant 0 : index
    %c0_8 = arith.constant 0 : index
    %11 = vector.load %arg4[%c0_7, %c0_8] : memref<32x16xf32, #tpu.memory_space<vmem>>, vector<32x16xf32>
    tpu.vector_store %arg4[%c0_7, %c0_8], %10 {strides = array<i32>} : memref<32x16xf32, #tpu.memory_space<vmem>>, vector<32x16xf32>,
    return
  }
  func.func @transform_0(%arg0: i32) -> (i32, i32) {
    %c0_i32 = arith.constant 0 : i32
    %c0_i32_0 = arith.constant 0 : i32
    return %arg0, %c0_i32 : i32, i32
  }
  func.func @transform_1(%arg0: i32) -> (i32, i32) {
    %c0_i32 = arith.constant 0 : i32
    %c0_i32_0 = arith.constant 0 : i32
    %c0_i32_1 = arith.constant 0 : i32
    return %c0_i32, %c0_i32_0 : i32, i32
  }
  func.func @transform_2(%arg0: i32) -> (i32, i32) {
    %c0_i32 = arith.constant 0 : i32
    %c0_i32_0 = arith.constant 0 : i32
    %c0_i32_1 = arith.constant 0 : i32
    return %c0_i32, %c0_i32_0 : i32, i32
  }
  func.func @transform_3(%arg0: i32) -> (i32, i32) {
    %c0_i32 = arith.constant 0 : i32
    %c0_i32_0 = arith.constant 0 : i32
    return %arg0, %c0_i32 : i32, i32
  }
}

</mosaic_0001>

<llo_original>
// kernel: tpu_custom_call.1
$region0: #{tpu_custom_call.1}
  #allocation0 [shape = 'u32[]', space=smem, size = 0x4, offset = 0x4, fixed_abs, tag = 'smem constant byte address 0x4 - core index']
  #allocation1 [shape = 'u32[144,128]{1,0:T(1,128)}', space=vmem, size = 0x12000, scoped, tag = 'internal scratch']
  %s0 = inlined_call_operand.vmem [shape: f32[32,16], index: 0, kind: input, shape index: {}]
  %s1 = inlined_call_operand.vmem [shape: bf16[32,32], index: 1, kind: input, shape index: {}]
  %s2 = inlined_call_operand.vmem [shape: bf16[16,16], index: 2, kind: input, shape index: {}]
  %s3 = inlined_call_operand.vmem [shape: f32[32,16], index: 3, kind: output, shape index: {}]
  %s4 = sld [smem:[#allocation0]]
  $region22: #{tpu_custom_call.1} parent=0
    _
  %s6 = ssub.s32 1, %s4
  %s7 = scalar_select 0, %s6, %s4
  // Predicated region
  $region2: #{tpu_custom_call.1} parent=0 // pred_check
    _
  $region3: #{tpu_custom_call.1} parent=0 // pred_check_branch
    %9 = sbr.rel (0) target = $region5
  $region4: #{tpu_custom_call.1} parent=0 // pred_region
    _
  $region5: #{tpu_custom_call.1} parent=0 // pred_fallthru
    _
  // Predicated region
  $region6: #{tpu_custom_call.1} parent=0 // pred_check
    _
  $region7: #{tpu_custom_call.1} parent=0 // pred_check_branch
    %11 = sbr.rel (0) target = $region9
  $region8: #{tpu_custom_call.1} parent=0 // pred_region
    _
  $region9: #{tpu_custom_call.1} parent=0 // pred_fallthru
    _
  // Predicated region
  $region10: #{tpu_custom_call.1} parent=0 // pred_check
    _
  $region11: #{tpu_custom_call.1} parent=0 // pred_check_branch
    %13 = sbr.rel (0) target = $region13
  $region12: #{tpu_custom_call.1} parent=0 // pred_region
    _
  $region13: #{tpu_custom_call.1} parent=0 // pred_fallthru
    _
  %v15 = vld [vmem:[%s0] sm:$0xff]
  %v16 = vld [vmem:[%s0 + $0x8] sm:$0xff]
  %v17 = vld [vmem:[%s0 + $0x10] sm:$0xff]
  %v18 = vld [vmem:[%s0 + $0x18] sm:$0xff]
  %v19 = vpack.c.bf16 %v16, %v15
  %v20 = vpack.c.bf16 %v18, %v17
  %v21 = vld [vmem:[%s2] sm:$0xf]
  %v22 = vld [vmem:[%s2 + $0x4] sm:$0xf]
  %v25 = vunpack.c.l.b16 %v21
  %v26 = vunpack.c.l.b16 %v22
  %v27 = vpack.c.b16 %v26, %v25
  %vm29 = vcmask 130048
  %v31 = vsel %vm29, %v19, 0
  %v34 = vsel %vm29, %v20, 0
  %36 = vmatprep.subr.bf16.mxu0 0
  %37 = vmatpush1.bf16.msra.mxu0 0
  %38 = vmatprep.subr.bf16.mxu0 0
  %39 = vmatpush1.bf16.msra.mxu0 0
  %40 = vmatprep.subr.bf16.mxu0 0
  %41 = vmatpush1.bf16.msra.mxu0 0
  %42 = vmatprep.subr.bf16.mxu0 0
  %43 = vmatpush1.bf16.msra.mxu0 0
  %44 = vmatprep.subr.bf16.mxu0 0
  %45 = vmatpush1.bf16.msra.mxu0 0
  %46 = vmatprep.subr.bf16.mxu0 0
  %47 = vmatpush1.bf16.msra.mxu0 0
  %48 = vmatprep.subr.bf16.mxu0 0
  %49 = vmatpush1.bf16.msra.mxu0 0
  %50 = vmatprep.subr.bf16.mxu0 0
  %51 = vmatpush1.bf16.msra.mxu0 %v27
  %52 = vmatprep.subr.bf16.mxu0 0
  %53 = vmatpush2.bf16.msra.mxu0 0
  %54 = vmatprep.subr.bf16.mxu0 0
  %55 = vmatpush2.bf16.msra.mxu0 0
  %56 = vmatprep.subr.bf16.mxu0 0
  %57 = vmatpush2.bf16.msra.mxu0 0
  %58 = vmatprep.subr.bf16.mxu0 0
  %59 = vmatpush2.bf16.msra.mxu0 0
  %60 = vmatprep.subr.bf16.mxu0 0
  %61 = vmatpush2.bf16.msra.mxu0 0
  %62 = vmatprep.subr.bf16.mxu0 0
  %63 = vmatpush2.bf16.msra.mxu0 0
  %64 = vmatprep.subr.bf16.mxu0 0
  %65 = vmatpush2.bf16.msra.mxu0 0
  %66 = vmatprep.subr.bf16.mxu0 0
  %67 = vmatpush2.bf16.msra.mxu0 0
  %68 = vmatprep.mubr.bf16.mxu0 0
  %69 = vmatmul.mubr.bf16.gmra.mxu0 %v31
  %v70 = vpop.f32.mrf.mxu0
  %v71 = vadd.f32 0.0, %v70
  %v72 = vpop.f32.mrf.mxu0
  %v73 = vpop.f32.mrf.mxu0
  %v74 = vadd.f32 0.0, %v73
  %v75 = vpop.f32.mrf.mxu0
  %76 = vmatprep.mubr.bf16.mxu0 0
  %77 = vmatmul.mubr.bf16.gmra.mxu0 %v34
  %v78 = vpop.f32.mrf.mxu0
  %v79 = vadd.f32 0.0, %v78
  %v80 = vpop.f32.mrf.mxu0
  %v81 = vpop.f32.mrf.mxu0
  %v82 = vadd.f32 0.0, %v81
  %v83 = vpop.f32.mrf.mxu0
  %84 = vdwg.mxu0
  %v85 = vld [vmem:[%s1] sm:$0xf]
  %v86 = vld [vmem:[%s1 + $0x4] sm:$0xf]
  %v87 = vld [vmem:[%s1 + $0x8] sm:$0xf]
  %v88 = vld [vmem:[%s1 + $0xc] sm:$0xf]
  %v89 = vpack.c.bf16 %v74, %v71
  %v90 = vpack.c.bf16 %v82, %v79
  %v95 = vunpack.c.l.b16 %v85
  %v96 = vunpack.c.l.b16 %v86
  %v97 = vunpack.c.l.b16 %v87
  %v98 = vunpack.c.l.b16 %v88
  %v99 = vpack.c.b16 %v96, %v95
  %v100 = vpack.c.b16 %v98, %v97
  %vm101 = vcmask 261120
  %v103 = vsel %vm101, %v99, 0
  %v106 = vsel %vm101, %v100, 0
  %108 = vmatprep.subr.bf16.mxu0 0
  %109 = vmatpush1.bf16.msra.mxu0 0
  %110 = vmatprep.subr.bf16.mxu0 0
  %111 = vmatpush1.bf16.msra.mxu0 0
  %112 = vmatprep.subr.bf16.mxu0 0
  %113 = vmatpush1.bf16.msra.mxu0 0
  %114 = vmatprep.subr.bf16.mxu0 0
  %115 = vmatpush1.bf16.msra.mxu0 0
  %116 = vmatprep.subr.bf16.mxu0 0
  %117 = vmatpush1.bf16.msra.mxu0 0
  %118 = vmatprep.subr.bf16.mxu0 0
  %119 = vmatpush1.bf16.msra.mxu0 0
  %120 = vmatprep.subr.bf16.mxu0 0
  %121 = vmatpush1.bf16.msra.mxu0 %v90
  %122 = vmatprep.subr.bf16.mxu0 0
  %123 = vmatpush1.bf16.msra.mxu0 %v89
  %124 = vmatprep.subr.bf16.mxu0 0
  %125 = vmatpush2.bf16.msra.mxu0 0
  %126 = vmatprep.subr.bf16.mxu0 0
  %127 = vmatpush2.bf16.msra.mxu0 0
  %128 = vmatprep.subr.bf16.mxu0 0
  %129 = vmatpush2.bf16.msra.mxu0 0
  %130 = vmatprep.subr.bf16.mxu0 0
  %131 = vmatpush2.bf16.msra.mxu0 0
  %132 = vmatprep.subr.bf16.mxu0 0
  %133 = vmatpush2.bf16.msra.mxu0 0
  %134 = vmatprep.subr.bf16.mxu0 0
  %135 = vmatpush2.bf16.msra.mxu0 0
  %136 = vmatprep.subr.bf16.mxu0 0
  %137 = vmatpush2.bf16.msra.mxu0 0
  %138 = vmatprep.subr.bf16.mxu0 0
  %139 = vmatpush2.bf16.msra.mxu0 0
  %140 = vmatprep.mubr.bf16.mxu0 0
  %141 = vmatmul.mubr.bf16.gmra.mxu0 %v103
  %v142 = vpop.f32.mrf.mxu0
  %v143 = vadd.f32 0.0, %v142
  %v144 = vpop.f32.mrf.mxu0
  %v145 = vpop.f32.mrf.mxu0
  %v146 = vadd.f32 0.0, %v145
  %v147 = vpop.f32.mrf.mxu0
  %148 = vmatprep.mubr.bf16.mxu0 0
  %149 = vmatmul.mubr.bf16.gmra.mxu0 %v106
  %v150 = vpop.f32.mrf.mxu0
  %v151 = vadd.f32 0.0, %v150
  %v152 = vpop.f32.mrf.mxu0
  %v153 = vpop.f32.mrf.mxu0
  %v154 = vadd.f32 0.0, %v153
  %v155 = vpop.f32.mrf.mxu0
  %156 = vdwg.mxu0
  %vm157 = vcmp.lt.f32.partialorder %v143, 0.5
  %vm158 = vcmp.lt.f32.partialorder %v146, 0.5
  %vm159 = vcmp.lt.f32.partialorder %v151, 0.5
  %vm160 = vcmp.lt.f32.partialorder %v154, 0.5
  %v161 = vsel %vm157, 1, 0
  %v162 = vsel %vm158, 1, 0
  %v163 = vsel %vm159, 1, 0
  %v164 = vsel %vm160, 1, 0
  %v165 = vcvt.s32.f32 %v161
  %v166 = vcvt.s32.f32 %v162
  %v167 = vcvt.s32.f32 %v163
  %v168 = vcvt.s32.f32 %v164
  %169 = vst.msk [vmem:[%s3] sm:$0xff] %vm29, %v165
  %170 = vst.msk [vmem:[%s3 + $0x8] sm:$0xff] %vm29, %v166
  %171 = vst.msk [vmem:[%s3 + $0x10] sm:$0xff] %vm29, %v167
  %172 = vst.msk [vmem:[%s3 + $0x18] sm:$0xff] %vm29, %v168
  // Predicated region
  $region14: #{tpu_custom_call.1} parent=0 // pred_check
    _
  $region15: #{tpu_custom_call.1} parent=0 // pred_check_branch
    %174 = sbr.rel (0) target = $region17
  $region16: #{tpu_custom_call.1} parent=0 // pred_region
    _
  $region17: #{tpu_custom_call.1} parent=0 // pred_fallthru
    _
  // Predicated region
  $region18: #{tpu_custom_call.1} parent=0 // pred_check
    _
  $region19: #{tpu_custom_call.1} parent=0 // pred_check_branch
    %176 = sbr.rel (0) target = $region21
  $region20: #{tpu_custom_call.1} parent=0 // pred_region
    _
  $region21: #{tpu_custom_call.1} parent=0 // pred_fallthru
    _

</llo_original>
